<compile_context>
chip_gen: v6e
topology: v6e:2x2x1
jax: 0.10.0
libtpu: 0.0.40
codegen_flags: <defaults>
</compile_context>

<pallas_src>
import jax
import jax.numpy as jnp
from jax.experimental import pallas as pl
from jax.experimental.pallas import tpu as pltpu


def _mse_none_kernel(s_ref, t_ref, o_ref):
    # elementwise (student - teacher)^2, no reduction (VPU-only, mem-bound)
    d = s_ref[...] - t_ref[...]
    o_ref[...] = d * d


def _min_sublanes(dtype):
    # dtype-aware sublane packing: f32 -> 8, bf16/f16 -> 16, int8/fp8 -> 32
    return {4: 8, 2: 16, 1: 32}.get(jnp.dtype(dtype).itemsize, 8)


def _round_up(x, m):
    return ((x + m - 1) // m) * m


def _target_block_bytes():
    """Per-array block byte budget, generation aware (trace-time only)."""
    kind = ""
    try:
        kind = jax.devices()[0].device_kind.lower()
    except Exception:
        pass
    if "v5" in kind or "v6" in kind:
        return 8 * 1024 * 1024   # 128 MiB VMEM generations: 8 MiB blocks
    return 4 * 1024 * 1024       # v7x (64 MiB VMEM) and unknown: 4 MiB blocks


def _pick_row_block(rows, lanes, itemsize, ms, target_bytes):
    """Rows-per-block from a byte budget, with >=2 / even grid steps for v7x."""
    row_bytes = lanes * itemsize
    tr = max(ms, (target_bytes // row_bytes // ms) * ms)
    total_bytes = rows * row_bytes
    if rows <= tr:
        # A single block would cover everything. Split into 2 blocks so the
        # "parallel" axis can shard across v7x's two TensorCores, but only when
        # the array is big enough (>= 1 MiB) that per-step overhead (~0.35 us)
        # stays negligible on 1-TC chips.
        if total_bytes >= (1 << 20) and rows >= 2 * ms:
            tr = _round_up(pl.cdiv(rows, 2), ms)
        else:
            tr = rows
    g = pl.cdiv(rows, tr)
    # Prefer an even step count (balanced across two TensorCores on v7x) when
    # it can be achieved by shrinking the block slightly.
    if g > 1 and g % 2 == 1 and rows > 2 * ms:
        tr2 = _round_up(pl.cdiv(rows, g + 1), ms)
        if tr2 >= ms and pl.cdiv(rows, tr2) % 2 == 0:
            tr = tr2
            g = pl.cdiv(rows, tr)
    return tr, g


def _mse_loss_none_impl(student_feat, teacher_feat):
    """F.mse_loss(student, teacher, reduction='none') as a Pallas TPU kernel."""
    assert student_feat.shape == teacher_feat.shape
    assert student_feat.dtype == teacher_feat.dtype
    orig_shape = student_feat.shape
    dtype = student_feat.dtype
    n_elem = student_feat.size
    if n_elem == 0:
        return jnp.zeros(orig_shape, dtype)

    itemsize = jnp.dtype(dtype).itemsize
    ms = _min_sublanes(dtype)
    target_bytes = _target_block_bytes()

    # Widest multiple of 128 lanes (<= 1024) that divides the element count.
    lanes = 0
    cand = 1024
    while cand >= 128:
        if n_elem % cand == 0:
            lanes = cand
            break
        cand -= 128

    if lanes:
        # ---- fast path: lane-dense 2-D view, zero wrapper HBM traffic ----
        rows = n_elem // lanes
        s2d = student_feat.reshape(rows, lanes)
        t2d = teacher_feat.reshape(rows, lanes)
        shape2d = (rows, lanes)
        tr, grid_n = _pick_row_block(rows, lanes, itemsize, ms, target_bytes)
        block = (tr, lanes)
        index_map = lambda i: (i, 0)
    else:
        # ---- ragged path (n_elem % 128 != 0): unpadded (1, N) view ----
        # Block lane dim is a multiple of 128 (or the full extent when small);
        # Pallas masks the OOB tail of the last block. No pad / no slice.
        s2d = student_feat.reshape(1, n_elem)
        t2d = teacher_feat.reshape(1, n_elem)
        shape2d = (1, n_elem)
        lmax = 128 * 1024
        lblk = n_elem if n_elem <= lmax else lmax
        grid_n = pl.cdiv(n_elem, lblk)
        block = (1, lblk)
        index_map = lambda i: (0, i)

    # vmem limit derived from actual need: 3 arrays x 2 pipeline buffers x
    # (sublane/lane padded) block bytes, +50% headroom, 32 MiB floor.
    padded_block_bytes = (_round_up(block[0], ms) *
                          _round_up(block[1], 128) * itemsize)
    vmem_limit = max(32 * 1024 * 1024, int(6 * padded_block_bytes * 1.5))

    out2d = pl.pallas_call(
        _mse_none_kernel,
        out_shape=jax.ShapeDtypeStruct(shape2d, dtype),
        grid_spec=pltpu.PrefetchScalarGridSpec(
            num_scalar_prefetch=0,
            grid=(grid_n,),
            in_specs=[
                pl.BlockSpec(block, index_map),
                pl.BlockSpec(block, index_map),
            ],
            out_specs=pl.BlockSpec(block, index_map),
        ),
        compiler_params=pltpu.CompilerParams(
            dimension_semantics=("parallel",),
            vmem_limit_bytes=vmem_limit,
        ),
    )(s2d, t2d)

    return out2d.reshape(orig_shape)


# Jit the public entry point so reshapes stay metadata-only bitcasts and the
# pallas_call is the only real dispatch.
mse_loss_none = jax.jit(_mse_loss_none_impl)


if __name__ == "__main__":
    # MSELoss has no parameters; build deterministic inputs.
    key = jax.random.PRNGKey(0)
    k1, k2 = jax.random.split(key)

    # 1) NCHW feature maps (divisible fast path: no pad, no output slice)
    shape = (2, 4, 16, 16)
    student = jax.random.normal(k1, shape, dtype=jnp.float32)
    teacher = jax.random.normal(k2, shape, dtype=jnp.float32)
    loss = mse_loss_none(student, teacher)
    jax.block_until_ready(loss)
    ref = (student - teacher) ** 2
    assert loss.shape == shape
    assert jnp.allclose(loss, ref, atol=1e-6, rtol=1e-6)

    # 2) ragged path (element count not a multiple of 128; unpadded (1,N) view)
    shape2 = (2, 3, 5, 7)
    s2 = jax.random.normal(k1, shape2, dtype=jnp.float32)
    t2 = jax.random.normal(k2, shape2, dtype=jnp.float32)
    loss2 = mse_loss_none(s2, t2)
    jax.block_until_ready(loss2)
    ref2 = (s2 - t2) ** 2
    assert loss2.shape == shape2
    assert jnp.allclose(loss2, ref2, atol=1e-6, rtol=1e-6)

    # 3) mid-size input (exercises the >=2-step / even-grid megacore split)
    shape3 = (4, 16, 64, 64)  # 1 MiB of f32 per array
    s3 = jax.random.normal(k1, shape3, dtype=jnp.float32)
    t3 = jax.random.normal(k2, shape3, dtype=jnp.float32)
    loss3 = mse_loss_none(s3, t3)
    jax.block_until_ready(loss3)
    ref3 = (s3 - t3) ** 2
    assert loss3.shape == shape3
    assert jnp.allclose(loss3, ref3, atol=1e-6, rtol=1e-6)

    print("KERNEL_OK")
</pallas_src>

<mosaic_0001>
module attributes {stable_mosaic.version = 11 : i64} {
  func.func @_mse_none_kernel(%arg0: i32, %arg1: memref<2x1024xf32, #tpu.memory_space<vmem>>, %arg2: memref<2x1024xf32, #tpu.memory_space<vmem>>, %arg3: memref<2x1024xf32, #tpu.memory_space<vmem>>) attributes {dimension_semantics = [#tpu.dimension_semantics<parallel>], iteration_bounds = array<i64: 1>, scalar_prefetch = 0 : i64, scratch_operands = 0 : i64, tpu.core_type = #tpu.core_type<tc>, window_params = [{transform_indices = @transform_0, window_bounds = array<i64: 2, 1024>}, {transform_indices = @transform_1, window_bounds = array<i64: 2, 1024>}, {transform_indices = @transform_2, window_bounds = array<i64: 2, 1024>}]} {
    %c0 = arith.constant 0 : index
    %c0_0 = arith.constant 0 : index
    %0 = vector.load %arg1[%c0, %c0_0] : memref<2x1024xf32, #tpu.memory_space<vmem>>, vector<2x1024xf32>
    %c0_1 = arith.constant 0 : index
    %c0_2 = arith.constant 0 : index
    %1 = vector.load %arg2[%c0_1, %c0_2] : memref<2x1024xf32, #tpu.memory_space<vmem>>, vector<2x1024xf32>
    %2 = arith.subf %0, %1 : vector<2x1024xf32>
    %3 = arith.mulf %2, %2 : vector<2x1024xf32>
    %c0_3 = arith.constant 0 : index
    %c0_4 = arith.constant 0 : index
    %4 = vector.load %arg3[%c0_3, %c0_4] : memref<2x1024xf32, #tpu.memory_space<vmem>>, vector<2x1024xf32>
    tpu.vector_store %arg3[%c0_3, %c0_4], %3 {strides = array<i32>} : memref<2x1024xf32, #tpu.memory_space<vmem>>, vector<2x1024xf32>,
    return
  }
  func.func @transform_0(%arg0: i32) -> (i32, i32) {
    %c0_i32 = arith.constant 0 : i32
    %c0_i32_0 = arith.constant 0 : i32
    return %arg0, %c0_i32 : i32, i32
  }
  func.func @transform_1(%arg0: i32) -> (i32, i32) {
    %c0_i32 = arith.constant 0 : i32
    %c0_i32_0 = arith.constant 0 : i32
    return %arg0, %c0_i32 : i32, i32
  }
  func.func @transform_2(%arg0: i32) -> (i32, i32) {
    %c0_i32 = arith.constant 0 : i32
    %c0_i32_0 = arith.constant 0 : i32
    return %arg0, %c0_i32 : i32, i32
  }
}

</mosaic_0001>

<llo_original>
// kernel: _mse_loss_none_impl.1
$region0: #{_mse_loss_none_impl.1}
  #allocation0 [shape = 'u32[]', space=smem, size = 0x4, offset = 0x4, fixed_abs, tag = 'smem constant byte address 0x4 - core index']
  #allocation1 [shape = 'u32[144,128]{1,0:T(1,128)}', space=vmem, size = 0x12000, scoped, tag = 'internal scratch']
  %s0 = inlined_call_operand.vmem [shape: f32[2,1024], index: 0, kind: input, shape index: {}]
  %s1 = inlined_call_operand.vmem [shape: f32[2,1024], index: 1, kind: input, shape index: {}]
  %s2 = inlined_call_operand.vmem [shape: f32[2,1024], index: 2, kind: output, shape index: {}]
  %s3 = sld [smem:[#allocation0]]
  $region18: #{_mse_loss_none_impl.1} parent=0
    _
  %s5 = ssub.s32 1, %s3
  %s6 = scalar_select 0, %s5, %s3
  // Predicated region
  $region2: #{_mse_loss_none_impl.1} parent=0 // pred_check
    _
  $region3: #{_mse_loss_none_impl.1} parent=0 // pred_check_branch
    %8 = sbr.rel (0) target = $region5
  $region4: #{_mse_loss_none_impl.1} parent=0 // pred_region
    _
  $region5: #{_mse_loss_none_impl.1} parent=0 // pred_fallthru
    _
  // Predicated region
  $region6: #{_mse_loss_none_impl.1} parent=0 // pred_check
    _
  $region7: #{_mse_loss_none_impl.1} parent=0 // pred_check_branch
    %10 = sbr.rel (0) target = $region9
  $region8: #{_mse_loss_none_impl.1} parent=0 // pred_region
    _
  $region9: #{_mse_loss_none_impl.1} parent=0 // pred_fallthru
    _
  %v11 = vld [vmem:[%s0] sm:$0xff]
  %v12 = vld [vmem:[%s0 + $0x8] sm:$0xff]
  %v13 = vld [vmem:[%s1] sm:$0xff]
  %v14 = vld [vmem:[%s1 + $0x8] sm:$0xff]
  %v15 = vsub.f32 %v11, %v13
  %v16 = vsub.f32 %v12, %v14
  %v17 = vmul.f32 %v15, %v15
  %v18 = vmul.f32 %v16, %v16
  %19 = vst [vmem:[%s2] sm:$0xff] %v17
  %20 = vst [vmem:[%s2 + $0x8] sm:$0xff] %v18
  // Predicated region
  $region10: #{_mse_loss_none_impl.1} parent=0 // pred_check
    _
  $region11: #{_mse_loss_none_impl.1} parent=0 // pred_check_branch
    %22 = sbr.rel (0) target = $region13
  $region12: #{_mse_loss_none_impl.1} parent=0 // pred_region
    _
  $region13: #{_mse_loss_none_impl.1} parent=0 // pred_fallthru
    _
  // Predicated region
  $region14: #{_mse_loss_none_impl.1} parent=0 // pred_check
    _
  $region15: #{_mse_loss_none_impl.1} parent=0 // pred_check_branch
    %24 = sbr.rel (0) target = $region17
  $region16: #{_mse_loss_none_impl.1} parent=0 // pred_region
    _
  $region17: #{_mse_loss_none_impl.1} parent=0 // pred_fallthru
    _

</llo_original>
